<compile_context>
chip_gen: v5e
topology: v5e:2x2
jax: 0.10.0
libtpu: 0.0.40
codegen_flags: <defaults>
</compile_context>

<pallas_src>
from functools import partial

import jax
import jax.numpy as jnp
import numpy as np
from jax.experimental import pallas as pl
from jax.experimental.pallas import tpu as pltpu


def _inv(x, approx):
    # EUP approximate reciprocal on the fast path; exact divide otherwise.
    if approx:
        return pl.reciprocal(x, approx=True)
    return 1.0 / x


# ---------------------------------------------------------------------------
# Kernel: TB batch items of SelfAttention + masked mean pooling per grid step
# ---------------------------------------------------------------------------
def _attn_pool_kernel(x_ref, mask_ref, w1_ref, b1_ref, w2_ref, b2_ref, out_ref,
                      *, approx):
    TB, S, H = x_ref.shape
    x = x_ref[...]                       # (TB, S, H)  f32
    mask = mask_ref[...]                 # (TB, 1, S)  f32
    w1 = w1_ref[...]                     # (H, H)      matmul dtype (bf16 or f32)
    b1 = b1_ref[...]                     # (1, H)      f32
    w2 = w2_ref[...]                     # (H, H)      matmul dtype
    b2 = b2_ref[...]                     # (1, H)      f32

    # SelfAttention projection: Linear -> ReLU -> Linear, flattened over
    # (TB*S, H) so one big matmul per step fills the MXU M-dimension.
    xf = x.reshape(TB * S, H).astype(w1.dtype)
    h = jnp.dot(xf, w1, preferred_element_type=jnp.float32) + b1
    h = jnp.maximum(h, 0.0)
    energy = jnp.dot(h.astype(w2.dtype), w2, preferred_element_type=jnp.float32) + b2
    energy = energy.reshape(TB, S, H)

    # softmax over the sequence axis (torch dim=1), kept in f32.
    m = jnp.max(energy, axis=1, keepdims=True)                  # (TB, 1, H)
    e = jnp.exp(energy - m)
    weights = e * _inv(jnp.sum(e, axis=1, keepdims=True), approx)

    out = x * weights                                           # (TB, S, H)  f32

    # Masked mean pooling over S as an MXU matmul: (TB,1,S) @ (TB,S,H).
    sum_emb = jnp.einsum("bks,bsh->bkh", mask, out,
                         preferred_element_type=jnp.float32)    # (TB, 1, H)
    sum_mask = jnp.maximum(jnp.sum(mask, axis=-1, keepdims=True), 1e-9)  # (TB,1,1)
    out_ref[...] = sum_emb * _inv(sum_mask, approx)


def _choose_block_b(B2, S, H):
    # Fill the MXU M-dimension (aim for TB*S >= 256; v5e only needs 128).
    tb = max(1, pl.cdiv(256, S))
    # Keep >= 2 grid steps so both v7x TensorCores get work.
    tb = min(tb, max(1, B2 // 2))
    # VMEM guard: keep the f32 x tile (and its in-kernel temporaries) modest so
    # the kernel stays well inside v7x's 32 MiB scoped-VMEM default.
    while tb > 1 and tb * S * H * 4 > (2 << 20):
        tb //= 2
    # Require an even batch split (avoids partial blocks).
    while B2 % tb:
        tb -= 1
    return tb


def attention_pool(x, mask, w1, b1, w2, b2, *, block_b=None, fast=True):
    """x: (B2, S, H), mask: (B2, S) -> pooled (B2, H), all f32."""
    B2, S, H = x.shape
    if block_b is None:
        block_b = _choose_block_b(B2, S, H)
    mm_dtype = jnp.bfloat16 if fast else jnp.float32
    mask3 = mask.astype(jnp.float32).reshape(B2, 1, S)   # lane-dense (S on lanes)

    # NOTE: w1/b1/w2/b2 use constant index maps (loaded once, never re-DMA'd);
    # pipeline_mode=pl.Buffered(1) could halve their VMEM footprint for large H.
    kernel = partial(_attn_pool_kernel, approx=fast)
    pooled = pl.pallas_call(
        kernel,
        out_shape=jax.ShapeDtypeStruct((B2, 1, H), jnp.float32),
        grid_spec=pltpu.PrefetchScalarGridSpec(
            num_scalar_prefetch=0,
            grid=(B2 // block_b,),
            in_specs=[
                pl.BlockSpec((block_b, S, H), lambda b: (b, 0, 0)),
                pl.BlockSpec((block_b, 1, S), lambda b: (b, 0, 0)),
                pl.BlockSpec((H, H), lambda b: (0, 0)),
                pl.BlockSpec((1, H), lambda b: (0, 0)),
                pl.BlockSpec((H, H), lambda b: (0, 0)),
                pl.BlockSpec((1, H), lambda b: (0, 0)),
            ],
            out_specs=pl.BlockSpec((block_b, 1, H), lambda b: (b, 0, 0)),
        ),
        compiler_params=pltpu.CompilerParams(
            dimension_semantics=("parallel",),
        ),
    )(x.astype(jnp.float32), mask3,
      w1.astype(mm_dtype), b1.astype(jnp.float32),
      w2.astype(mm_dtype), b2.astype(jnp.float32))
    return pooled[:, 0, :]  # (B2, H)


# ---------------------------------------------------------------------------
# Full CosineLoss.forward
# ---------------------------------------------------------------------------
@partial(jax.jit, static_argnames=("fast",))
def cosine_loss_forward(em1, mask1, em2, mask2, labels, params, fast=True):
    w1, b1, w2, b2 = params
    B = em1.shape[0]

    # Fuse the two SelfAttention+pooling passes into ONE pallas_call by
    # stacking (em1, em2) along the batch axis.
    x = jnp.concatenate([em1, em2], axis=0)          # (2B, S, H)
    mask = jnp.concatenate([mask1, mask2], axis=0)   # (2B, S)
    pooled = attention_pool(x, mask, w1, b1, w2, b2, fast=fast)
    u, v = pooled[:B], pooled[B:]

    # Cosine similarity + MSE epilogue: O(B*H) work, kept in plain JAX (a
    # dedicated pallas_call would be pure launch/DMA overhead).
    dot = jnp.sum(u * v, axis=-1)
    nu2 = jnp.sum(u * u, axis=-1)
    nv2 = jnp.sum(v * v, axis=-1)
    eps = 1e-8  # torch.cosine_similarity: dot / max(||u||*||v||, eps)
    sim = dot * jax.lax.rsqrt(jnp.maximum(nu2 * nv2, eps * eps))
    loss = jnp.mean((sim - labels) ** 2)
    return sim, loss


# ---------------------------------------------------------------------------
# Plain-JAX reference for correctness check
# ---------------------------------------------------------------------------
def _reference(em1, mask1, em2, mask2, labels, params):
    w1, b1, w2, b2 = params

    def attn(x):
        h = jnp.maximum(x @ w1 + b1, 0.0)
        energy = h @ w2 + b2
        weights = jax.nn.softmax(energy, axis=1)
        return x * weights

    def pool(x, m):
        mf = m.astype(jnp.float32)[..., None]
        s = jnp.sum(x * mf, axis=1)
        sm = jnp.maximum(jnp.sum(mf, axis=1), 1e-9)
        return s / sm

    u = pool(attn(em1), mask1)
    v = pool(attn(em2), mask2)
    dot = jnp.sum(u * v, axis=-1)
    nu2 = jnp.sum(u * u, axis=-1)
    nv2 = jnp.sum(v * v, axis=-1)
    sim = dot / jnp.sqrt(jnp.maximum(nu2 * nv2, 1e-16))
    return sim, jnp.mean((sim - labels) ** 2)


if __name__ == "__main__":
    # H = 128 keeps the pooled-output stores lane-dense (multiple of 128 lanes).
    B, S, H = 2, 8, 128

    key = jax.random.PRNGKey(0)
    k_em1, k_em2, k_m1, k_m2, k_lab, k_w1, k_b1, k_w2, k_b2 = jax.random.split(key, 9)

    em1 = jax.random.normal(k_em1, (B, S, H), jnp.float32)
    em2 = jax.random.normal(k_em2, (B, S, H), jnp.float32)
    # attention-style masks: 1 for valid tokens, 0 for padding
    mask1 = (jax.random.uniform(k_m1, (B, S)) > 0.3).astype(jnp.float32)
    mask2 = (jax.random.uniform(k_m2, (B, S)) > 0.3).astype(jnp.float32)
    mask1 = mask1.at[:, 0].set(1.0)
    mask2 = mask2.at[:, 0].set(1.0)
    labels = jax.random.uniform(k_lab, (B,), jnp.float32)

    # Synthetic parameters for SelfAttention's two Linear(H, H) layers.
    bound = 1.0 / np.sqrt(H)
    w1 = jax.random.uniform(k_w1, (H, H), jnp.float32, -bound, bound)
    b1 = jax.random.uniform(k_b1, (1, H), jnp.float32, -bound, bound)
    w2 = jax.random.uniform(k_w2, (H, H), jnp.float32, -bound, bound)
    b2 = jax.random.uniform(k_b2, (1, H), jnp.float32, -bound, bound)
    params = (w1, b1, w2, b2)

    sim_ref, loss_ref = _reference(em1, mask1, em2, mask2, labels, params)

    # Exact path (f32 MXU matmuls, exact divides): tight semantic check.
    sim, loss = cosine_loss_forward(em1, mask1, em2, mask2, labels, params, fast=False)
    jax.block_until_ready((sim, loss))
    np.testing.assert_allclose(np.asarray(sim), np.asarray(sim_ref), rtol=1e-4, atol=1e-4)
    np.testing.assert_allclose(np.asarray(loss), np.asarray(loss_ref), rtol=1e-4, atol=1e-4)

    # Fast path (bf16 MXU operands + EUP approx reciprocals): looser tolerance.
    sim_f, loss_f = cosine_loss_forward(em1, mask1, em2, mask2, labels, params, fast=True)
    jax.block_until_ready((sim_f, loss_f))
    np.testing.assert_allclose(np.asarray(sim_f), np.asarray(sim_ref), rtol=0.05, atol=0.05)
    np.testing.assert_allclose(np.asarray(loss_f), np.asarray(loss_ref), rtol=0.1, atol=0.05)

    print("KERNEL_OK")
</pallas_src>

<mosaic_0001>
module attributes {stable_mosaic.version = 11 : i64} {
  func.func @_attn_pool_kernel(%arg0: i32, %arg1: memref<2x8x128xf32, #tpu.memory_space<vmem>>, %arg2: memref<2x1x8xf32, #tpu.memory_space<vmem>>, %arg3: memref<128x128xf32, #tpu.memory_space<vmem>>, %arg4: memref<1x128xf32, #tpu.memory_space<vmem>>, %arg5: memref<128x128xf32, #tpu.memory_space<vmem>>, %arg6: memref<1x128xf32, #tpu.memory_space<vmem>>, %arg7: memref<2x1x128xf32, #tpu.memory_space<vmem>>) attributes {dimension_semantics = [#tpu.dimension_semantics<parallel>], iteration_bounds = array<i64: 2>, scalar_prefetch = 0 : i64, scratch_operands = 0 : i64, tpu.core_type = #tpu.core_type<tc>, window_params = [{transform_indices = @transform_0, window_bounds = array<i64: 2, 8, 128>}, {transform_indices = @transform_1, window_bounds = array<i64: 2, 1, 8>}, {pipeline_mode = #tpu.pipeline_mode<synchronous>, transform_indices = @transform_2, window_bounds = array<i64: 128, 128>}, {pipeline_mode = #tpu.pipeline_mode<synchronous>, transform_indices = @transform_3, window_bounds = array<i64: 1, 128>}, {pipeline_mode = #tpu.pipeline_mode<synchronous>, transform_indices = @transform_4, window_bounds = array<i64: 128, 128>}, {pipeline_mode = #tpu.pipeline_mode<synchronous>, transform_indices = @transform_5, window_bounds = array<i64: 1, 128>}, {transform_indices = @transform_6, window_bounds = array<i64: 2, 1, 128>}]} {
    %c0 = arith.constant 0 : index
    %c0_0 = arith.constant 0 : index
    %c0_1 = arith.constant 0 : index
    %0 = vector.load %arg1[%c0, %c0_0, %c0_1] : memref<2x8x128xf32, #tpu.memory_space<vmem>>, vector<2x8x128xf32>
    %c0_2 = arith.constant 0 : index
    %c0_3 = arith.constant 0 : index
    %c0_4 = arith.constant 0 : index
    %1 = vector.load %arg2[%c0_2, %c0_3, %c0_4] : memref<2x1x8xf32, #tpu.memory_space<vmem>>, vector<2x1x8xf32>
    %c0_5 = arith.constant 0 : index
    %c0_6 = arith.constant 0 : index
    %2 = vector.load %arg3[%c0_5, %c0_6] : memref<128x128xf32, #tpu.memory_space<vmem>>, vector<128x128xf32>
    %c0_7 = arith.constant 0 : index
    %c0_8 = arith.constant 0 : index
    %3 = vector.load %arg4[%c0_7, %c0_8] : memref<1x128xf32, #tpu.memory_space<vmem>>, vector<1x128xf32>
    %c0_9 = arith.constant 0 : index
    %c0_10 = arith.constant 0 : index
    %4 = vector.load %arg5[%c0_9, %c0_10] : memref<128x128xf32, #tpu.memory_space<vmem>>, vector<128x128xf32>
    %c0_11 = arith.constant 0 : index
    %c0_12 = arith.constant 0 : index
    %5 = vector.load %arg6[%c0_11, %c0_12] : memref<1x128xf32, #tpu.memory_space<vmem>>, vector<1x128xf32>
    %6 = vector.shape_cast %0 : vector<2x8x128xf32> to vector<16x128xf32>
    %cst = arith.constant dense<0.000000e+00> : vector<16x128xf32>
    %7 = tpu.matmul %6, %2, %cst {dimension_numbers = #tpu.dot_dimension_numbers<[1], [0], [0], [1], [0, 0, 1, 1], [], []>} : vector<16x128xf32>, vector<128x128xf32>, vector<16x128xf32> -> vector<16x128xf32>
    %8 = vector.broadcast %3 : vector<1x128xf32> to vector<16x128xf32>
    %9 = arith.addf %7, %8 : vector<16x128xf32>
    %cst_13 = arith.constant 0.000000e+00 : f32
    %10 = vector.broadcast %cst_13 : f32 to vector<16x128xf32>
    %11 = arith.maximumf %9, %10 : vector<16x128xf32>
    %cst_14 = arith.constant dense<0.000000e+00> : vector<16x128xf32>
    %12 = tpu.matmul %11, %4, %cst_14 {dimension_numbers = #tpu.dot_dimension_numbers<[1], [0], [0], [1], [0, 0, 1, 1], [], []>} : vector<16x128xf32>, vector<128x128xf32>, vector<16x128xf32> -> vector<16x128xf32>
    %13 = vector.broadcast %5 : vector<1x128xf32> to vector<16x128xf32>
    %14 = arith.addf %12, %13 : vector<16x128xf32>
    %15 = vector.shape_cast %14 : vector<16x128xf32> to vector<2x8x128xf32>
    %cst_15 = arith.constant dense<0xFF800000> : vector<2x128xf32>
    %16 = vector.multi_reduction <maximumf>, %15, %cst_15 [1] : vector<2x8x128xf32> to vector<2x128xf32>
    %17 = vector.shape_cast %16 : vector<2x128xf32> to vector<2x1x128xf32>
    %18 = vector.broadcast %17 : vector<2x1x128xf32> to vector<2x8x128xf32>
    %19 = arith.subf %15, %18 : vector<2x8x128xf32>
    %20 = math.exp %19 : vector<2x8x128xf32>
    %cst_16 = arith.constant dense<0.000000e+00> : vector<2x128xf32>
    %21 = vector.multi_reduction <add>, %20, %cst_16 [1] : vector<2x8x128xf32> to vector<2x128xf32>
    %22 = vector.shape_cast %21 : vector<2x128xf32> to vector<2x1x128xf32>
    %cst_17 = arith.constant 1.000000e+00 : f32
    %23 = vector.broadcast %cst_17 : f32 to vector<2x1x128xf32>
    %24 = arith.divf %23, %22 : vector<2x1x128xf32>
    %25 = vector.broadcast %24 : vector<2x1x128xf32> to vector<2x8x128xf32>
    %26 = arith.mulf %20, %25 : vector<2x8x128xf32>
    %27 = arith.mulf %0, %26 : vector<2x8x128xf32>
    "tpu.trace_start"() <{level = 10 : i32, message = "bks,bsh->bkh"}> : () -> ()
    %cst_18 = arith.constant dense<0.000000e+00> : vector<2x1x128xf32>
    %28 = tpu.matmul %1, %27, %cst_18 {dimension_numbers = #tpu.dot_dimension_numbers<[2], [1], [1], [2], [0, 0, 0, 1, 1, 2], [0], [0]>} : vector<2x1x8xf32>, vector<2x8x128xf32>, vector<2x1x128xf32> -> vector<2x1x128xf32>
    "tpu.trace_stop"() : () -> ()
    %cst_19 = arith.constant dense<0.000000e+00> : vector<2x1xf32>
    %29 = vector.multi_reduction <add>, %1, %cst_19 [2] : vector<2x1x8xf32> to vector<2x1xf32>
    %30 = vector.shape_cast %29 : vector<2x1xf32> to vector<2x1x1xf32>
    %cst_20 = arith.constant 9.99999971E-10 : f32
    %31 = vector.broadcast %cst_20 : f32 to vector<2x1x1xf32>
    %32 = arith.maximumf %30, %31 : vector<2x1x1xf32>
    %cst_21 = arith.constant 1.000000e+00 : f32
    %33 = vector.broadcast %cst_21 : f32 to vector<2x1x1xf32>
    %34 = arith.divf %33, %32 : vector<2x1x1xf32>
    %35 = vector.broadcast %34 : vector<2x1x1xf32> to vector<2x1x128xf32>
    %36 = arith.mulf %28, %35 : vector<2x1x128xf32>
    %c0_22 = arith.constant 0 : index
    %c0_23 = arith.constant 0 : index
    %c0_24 = arith.constant 0 : index
    %37 = vector.load %arg7[%c0_22, %c0_23, %c0_24] : memref<2x1x128xf32, #tpu.memory_space<vmem>>, vector<2x1x128xf32>
    tpu.vector_store %arg7[%c0_22, %c0_23, %c0_24], %36 {strides = array<i32>} : memref<2x1x128xf32, #tpu.memory_space<vmem>>, vector<2x1x128xf32>,
    return
  }
  func.func @transform_0(%arg0: i32) -> (i32, i32, i32) {
    %c0_i32 = arith.constant 0 : i32
    %c0_i32_0 = arith.constant 0 : i32
    %c0_i32_1 = arith.constant 0 : i32
    return %arg0, %c0_i32, %c0_i32_0 : i32, i32, i32
  }
  func.func @transform_1(%arg0: i32) -> (i32, i32, i32) {
    %c0_i32 = arith.constant 0 : i32
    %c0_i32_0 = arith.constant 0 : i32
    %c0_i32_1 = arith.constant 0 : i32
    return %arg0, %c0_i32, %c0_i32_0 : i32, i32, i32
  }
  func.func @transform_2(%arg0: i32) -> (i32, i32) {
    %c0_i32 = arith.constant 0 : i32
    %c0_i32_0 = arith.constant 0 : i32
    %c0_i32_1 = arith.constant 0 : i32
    return %c0_i32, %c0_i32_0 : i32, i32
  }
  func.func @transform_3(%arg0: i32) -> (i32, i32) {
    %c0_i32 = arith.constant 0 : i32
    %c0_i32_0 = arith.constant 0 : i32
    %c0_i32_1 = arith.constant 0 : i32
    return %c0_i32, %c0_i32_0 : i32, i32
  }
  func.func @transform_4(%arg0: i32) -> (i32, i32) {
    %c0_i32 = arith.constant 0 : i32
    %c0_i32_0 = arith.constant 0 : i32
    %c0_i32_1 = arith.constant 0 : i32
    return %c0_i32, %c0_i32_0 : i32, i32
  }
  func.func @transform_5(%arg0: i32) -> (i32, i32) {
    %c0_i32 = arith.constant 0 : i32
    %c0_i32_0 = arith.constant 0 : i32
    %c0_i32_1 = arith.constant 0 : i32
    return %c0_i32, %c0_i32_0 : i32, i32
  }
  func.func @transform_6(%arg0: i32) -> (i32, i32, i32) {
    %c0_i32 = arith.constant 0 : i32
    %c0_i32_0 = arith.constant 0 : i32
    %c0_i32_1 = arith.constant 0 : i32
    return %arg0, %c0_i32, %c0_i32_0 : i32, i32, i32
  }
}

</mosaic_0001>

<llo_original>
// kernel: cosine_loss_forward.1
$region0: #{cosine_loss_forward.1}
  #allocation0 [shape = 'u32[]', space=smem, size = 0x4, offset = 0x4, fixed_abs, tag = 'smem constant byte address 0x4 - core index']
  #allocation1 [shape = 'u32[72,128]{1,0:T(1,128)}', space=vmem, size = 0x9000, scoped, tag = 'internal scratch']
  %s0 = inlined_call_operand.vmem [shape: f32[4,8,128], index: 0, kind: input, shape index: {}]
  %s1 = inlined_call_operand.vmem [shape: f32[4,1,8], index: 1, kind: input, shape index: {}]
  %s2 = inlined_call_operand.hbm [shape: f32[128,128], index: 2, kind: input, shape index: {}]
  %s3 = inlined_call_operand.vmem [shape: f32[1,128], index: 3, kind: input, shape index: {}]
  %s4 = inlined_call_operand.hbm [shape: f32[128,128], index: 4, kind: input, shape index: {}]
  %s5 = inlined_call_operand.vmem [shape: f32[1,128], index: 5, kind: input, shape index: {}]
  %s6 = inlined_call_operand.vmem [shape: f32[4,1,128], index: 6, kind: output, shape index: {}]
  %s7 = sld [smem:[#allocation0]]
  $region65: #{cosine_loss_forward.1} parent=0
    _
  %s9 = ssub.s32 1, %s7
  %s10 = scalar_select 0, %s9, %s7
  $region1: #{cosine_loss_forward.1} parent=0
    #allocation2 [shape = 'u8[65536]{0}', space=vmem, size = 0x10000, scoped, tag = 'input window, operand 2, single buffered']
    #allocation3 [shape = 's32[2]{0}', space=sflag, size = 0x8, scoped, tag = 'scoped memory for cosine_loss_forward.1']
    #allocation4 [shape = 'u8[65536]{0}', space=vmem, size = 0x10000, scoped, tag = 'input window, operand 4, single buffered']
    #allocation5 [shape = 's32[1]{0}', space=sflag, size = 0x4, scoped, tag = 'scoped memory for cosine_loss_forward.1']
    %11 = vsyncpa [#allocation3], 0
    %12 = vsyncpa [#allocation5], 0
    loop: start=0, step=1, limit=4
    $region2: #{cosine_loss_forward.1} parent=1 // loop_pre_header
      _
    $region3: #{cosine_loss_forward.1} parent=1 // loop_header
      %s14 = sphi 0, %s18
      %p15 = scmp.ge.s32.totalorder %s14, 4
      %s24 = sphi 0, %s26
      %s27 = sphi 0, %s24
      %s28 = sphi 0, %s27
      %s44 = sphi 0, %s28
      %s50 = sphi 0, %s52
      %s53 = sphi 0, %s50
      %s54 = sphi 0, %s53
      %s70 = sphi 0, %s54
      %s74 = sphi 0, %s74
      %s76 = sphi 0, %s74
      %s77 = sphi 0, %s76
      %s91 = sphi 0, %s77
      %s95 = sphi 0, %s95
      %s97 = sphi 0, %s95
      %s98 = sphi 0, %s97
      %s112 = sphi 0, %s98
      %s116 = sphi 0, %s116
      %s118 = sphi 0, %s116
      %s119 = sphi 0, %s118
      %s133 = sphi 0, %s119
      %s137 = sphi 0, %s137
      %s139 = sphi 0, %s137
      %s140 = sphi 0, %s139
      %s154 = sphi 0, %s140
      %s160 = sphi 0, %s162
      %s163 = sphi 0, %s160
      %s164 = sphi 0, %s163
      %s180 = sphi 0, %s164
    $region4: #{cosine_loss_forward.1} parent=1 // loop_header_branch
      %17 = sbr.rel (%p15) target = $region8
    $region5: #{cosine_loss_forward.1} parent=1 // loop_body
      %s19 = ssub.s32 %s14, 1
      %s20 = ssub.s32 %s14, 2
      %s21 = sadd.s32 %s14, 1
      %s22 = ssub.s32 %s14, %s21
      %p23 = scmp.eq.s32.totalorder %s22, 0
      %s25 = sadd.s32 %s24, 1
      %s26 = scalar_select %p23, %s24, %s25
      %p29 = pneg %p23
      %p30 = scmp.eq.s32.totalorder %s14, 1
      %p31 = por %p29, %p30
      %p32 = scmp.ne.s32.totalorder %s24, %s27
      %p33 = scmp.eq.s32.totalorder %s14, 0
      %p34 = por %p32, %p33
      %p35 = scmp.ne.s32.totalorder %s24, %s27
      %p36 = scmp.eq.s32.totalorder %s19, 1
      %p37 = por %p35, %p36
      %p38 = scmp.ne.s32.totalorder %s27, %s28
      %p39 = scmp.eq.s32.totalorder %s19, 0
      %p40 = por %p38, %p39
      %p41 = scmp.ne.s32.totalorder %s27, %s28
      %p42 = scmp.eq.s32.totalorder %s20, 1
      %p43 = por %p41, %p42
      %p45 = scmp.ne.s32.totalorder %s28, %s44
      %p46 = scmp.eq.s32.totalorder %s20, 0
      %p47 = por %p45, %p46
      %s48 = ssub.s32 %s14, %s21
      %p49 = scmp.eq.s32.totalorder %s48, 0
      %s51 = sadd.s32 %s50, 1
      %s52 = scalar_select %p49, %s50, %s51
      %p55 = pneg %p49
      %p56 = scmp.eq.s32.totalorder %s14, 1
      %p57 = por %p55, %p56
      %p58 = scmp.ne.s32.totalorder %s50, %s53
      %p59 = scmp.eq.s32.totalorder %s14, 0
      %p60 = por %p58, %p59
      %p61 = scmp.ne.s32.totalorder %s50, %s53
      %p62 = scmp.eq.s32.totalorder %s19, 1
      %p63 = por %p61, %p62
      %p64 = scmp.ne.s32.totalorder %s53, %s54
      %p65 = scmp.eq.s32.totalorder %s19, 0
      %p66 = por %p64, %p65
      %p67 = scmp.ne.s32.totalorder %s53, %s54
      %p68 = scmp.eq.s32.totalorder %s20, 1
      %p69 = por %p67, %p68
      %p71 = scmp.ne.s32.totalorder %s54, %s70
      %p72 = scmp.eq.s32.totalorder %s20, 0
      %p73 = por %p71, %p72
      %s75 = sadd.s32 %s74, 1
      %p78 = scmp.eq.s32.totalorder %s14, 1
      %p79 = scmp.ne.s32.totalorder %s74, %s76
      %p80 = scmp.eq.s32.totalorder %s14, 0
      %p81 = por %p79, %p80
      %p82 = scmp.ne.s32.totalorder %s74, %s76
      %p83 = scmp.eq.s32.totalorder %s19, 1
      %p84 = por %p82, %p83
      %p85 = scmp.ne.s32.totalorder %s76, %s77
      %p86 = scmp.eq.s32.totalorder %s19, 0
      %p87 = por %p85, %p86
      %p88 = scmp.ne.s32.totalorder %s76, %s77
      %p89 = scmp.eq.s32.totalorder %s20, 1
      %p90 = por %p88, %p89
      %p92 = scmp.ne.s32.totalorder %s77, %s91
      %p93 = scmp.eq.s32.totalorder %s20, 0
      %p94 = por %p92, %p93
      %s96 = sadd.s32 %s95, 1
      %p99 = scmp.eq.s32.totalorder %s14, 1
      %p100 = scmp.ne.s32.totalorder %s95, %s97
      %p101 = scmp.eq.s32.totalorder %s14, 0
      %p102 = por %p100, %p101
      %p103 = scmp.ne.s32.totalorder %s95, %s97
      %p104 = scmp.eq.s32.totalorder %s19, 1
      %p105 = por %p103, %p104
      %p106 = scmp.ne.s32.totalorder %s97, %s98
      %p107 = scmp.eq.s32.totalorder %s19, 0
      %p108 = por %p106, %p107
      %p109 = scmp.ne.s32.totalorder %s97, %s98
      %p110 = scmp.eq.s32.totalorder %s20, 1
      %p111 = por %p109, %p110
      %p113 = scmp.ne.s32.totalorder %s98, %s112
      %p114 = scmp.eq.s32.totalorder %s20, 0
      %p115 = por %p113, %p114
      %s117 = sadd.s32 %s116, 1
      %p120 = scmp.eq.s32.totalorder %s14, 1
      %p121 = scmp.ne.s32.totalorder %s116, %s118
      %p122 = scmp.eq.s32.totalorder %s14, 0
      %p123 = por %p121, %p122
      %p124 = scmp.ne.s32.totalorder %s116, %s118
      %p125 = scmp.eq.s32.totalorder %s19, 1
      %p126 = por %p124, %p125
      %p127 = scmp.ne.s32.totalorder %s118, %s119
      %p128 = scmp.eq.s32.totalorder %s19, 0
      %p129 = por %p127, %p128
      %p130 = scmp.ne.s32.totalorder %s118, %s119
      %p131 = scmp.eq.s32.totalorder %s20, 1
      %p132 = por %p130, %p131
      %p134 = scmp.ne.s32.totalorder %s119, %s133
      %p135 = scmp.eq.s32.totalorder %s20, 0
      %p136 = por %p134, %p135
      %s138 = sadd.s32 %s137, 1
      %p141 = scmp.eq.s32.totalorder %s14, 1
      %p142 = scmp.ne.s32.totalorder %s137, %s139
      %p143 = scmp.eq.s32.totalorder %s14, 0
      %p144 = por %p142, %p143
      %p145 = scmp.ne.s32.totalorder %s137, %s139
      %p146 = scmp.eq.s32.totalorder %s19, 1
      %p147 = por %p145, %p146
      %p148 = scmp.ne.s32.totalorder %s139, %s140
      %p149 = scmp.eq.s32.totalorder %s19, 0
      %p150 = por %p148, %p149
      %p151 = scmp.ne.s32.totalorder %s139, %s140
      %p152 = scmp.eq.s32.totalorder %s20, 1
      %p153 = por %p151, %p152
      %p155 = scmp.ne.s32.totalorder %s140, %s154
      %p156 = scmp.eq.s32.totalorder %s20, 0
      %p157 = por %p155, %p156
      %s158 = ssub.s32 %s14, %s21
      %p159 = scmp.eq.s32.totalorder %s158, 0
      %s161 = sadd.s32 %s160, 1
      %s162 = scalar_select %p159, %s160, %s161
      %p165 = pneg %p159
      %p166 = scmp.eq.s32.totalorder %s14, 1
      %p167 = por %p165, %p166
      %p168 = scmp.ne.s32.totalorder %s160, %s163
      %p169 = scmp.eq.s32.totalorder %s14, 0
      %p170 = por %p168, %p169
      %p171 = scmp.ne.s32.totalorder %s160, %s163
      %p172 = scmp.eq.s32.totalorder %s19, 1
      %p173 = por %p171, %p172
      %p174 = scmp.ne.s32.totalorder %s163, %s164
      %p175 = scmp.eq.s32.totalorder %s19, 0
      %p176 = por %p174, %p175
      %p177 = scmp.ne.s32.totalorder %s163, %s164
      %p178 = scmp.eq.s32.totalorder %s20, 1
      %p179 = por %p177, %p178
      %p181 = scmp.ne.s32.totalorder %s164, %s180
      %p182 = scmp.eq.s32.totalorder %s20, 0
      %p183 = por %p181, %p182
      %p184 = scmp.le.s32.totalorder 1, %s14
      %p185 = scmp.lt.s32.totalorder %s14, 3
      %p186 = pnand %p184, %p185
      %p187 = pneg %p186
      // Predicated region
      $region9: #{cosine_loss_forward.1} parent=5 // pred_check
        _
      $region10: #{cosine_loss_forward.1} parent=5 // pred_check_branch
        %189 = sbr.rel (%p186) target = $region12
      $region11: #{cosine_loss_forward.1} parent=5 // pred_region
        %s190 = ssub.s32 %s14, 1
        // Predicated region
        $region13: #{cosine_loss_forward.1} parent=11 // pred_check
          %p191 = pneg %p87
        $region14: #{cosine_loss_forward.1} parent=11 // pred_check_branch
          %193 = sbr.rel (%p191) target = $region16
        $region15: #{cosine_loss_forward.1} parent=11 // pred_region
          %195 = vsyncadd [#allocation3], 0
          %s196 = sshll.u32 %s2, 4
          %s197 = int_to_ptr.hbm [resolvable:$true] %s196
          %s198 = sshll.u32 [#allocation2], 4
          %s199 = int_to_ptr.vmem [resolvable:$true] %s198
          %204 = dma.hbm_to_vmem [thread:$0]  %s197, 2048, %s199, [#allocation3], 128, 128, 8
        $region16: #{cosine_loss_forward.1} parent=11 // pred_fallthru
          _
        // Predicated region
        $region17: #{cosine_loss_forward.1} parent=11 // pred_check
          %p205 = pneg %p108
        $region18: #{cosine_loss_forward.1} parent=11 // pred_check_branch
          %207 = sbr.rel (%p205) target = $region20
        $region19: #{cosine_loss_forward.1} parent=11 // pred_region
          _
        $region20: #{cosine_loss_forward.1} parent=11 // pred_fallthru
          _
        // Predicated region
        $region21: #{cosine_loss_forward.1} parent=11 // pred_check
          %p208 = pneg %p129
        $region22: #{cosine_loss_forward.1} parent=11 // pred_check_branch
          %210 = sbr.rel (%p208) target = $region24
        $region23: #{cosine_loss_forward.1} parent=11 // pred_region
          %212 = vsyncadd [#allocation5], 0
          %s213 = sshll.u32 %s4, 4
          %s214 = int_to_ptr.hbm [resolvable:$true] %s213
          %s215 = sshll.u32 [#allocation4], 4
          %s216 = int_to_ptr.vmem [resolvable:$true] %s215
          %221 = dma.hbm_to_vmem [thread:$0]  %s214, 2048, %s216, [#allocation5], 128, 128, 8
        $region24: #{cosine_loss_forward.1} parent=11 // pred_fallthru
          _
        // Predicated region
        $region25: #{cosine_loss_forward.1} parent=11 // pred_check
          %p222 = pneg %p150
        $region26: #{cosine_loss_forward.1} parent=11 // pred_check_branch
          %224 = sbr.rel (%p222) target = $region28
        $region27: #{cosine_loss_forward.1} parent=11 // pred_region
          _
        $region28: #{cosine_loss_forward.1} parent=11 // pred_fallthru
          _
      $region12: #{cosine_loss_forward.1} parent=5 // pred_fallthru
        _
      %p225 = scmp.lt.s32.totalorder %s14, 2
      // Predicated region
      $region29: #{cosine_loss_forward.1} parent=5 // pred_check
        %p226 = pneg %p225
      $region30: #{cosine_loss_forward.1} parent=5 // pred_check_branch
        %228 = sbr.rel (%p226) target = $region32
      $region31: #{cosine_loss_forward.1} parent=5 // pred_region
        // Predicated region
        $region33: #{cosine_loss_forward.1} parent=31 // pred_check
          %p229 = pneg %p34
        $region34: #{cosine_loss_forward.1} parent=31 // pred_check_branch
          %231 = sbr.rel (%p229) target = $region36
        $region35: #{cosine_loss_forward.1} parent=31 // pred_region
          %s232 = smul.u32 2, %s14
          %p233 = scmp.lt.s32.totalorder %s232, 3
          %s234 = scalar_select %p233, %s232, 3
          %s235 = smul.addr %s234, 8
          %s236 = scalar_lea.vmem %s0, %s235
          %s237 = smul.u32 2, %s14
        $region36: #{cosine_loss_forward.1} parent=31 // pred_fallthru
          _
        // Predicated region
        $region37: #{cosine_loss_forward.1} parent=31 // pred_check
          %p238 = pneg %p60
        $region38: #{cosine_loss_forward.1} parent=31 // pred_check_branch
          %240 = sbr.rel (%p238) target = $region40
        $region39: #{cosine_loss_forward.1} parent=31 // pred_region
          %s241 = smul.u32 2, %s14
          %p242 = scmp.lt.s32.totalorder %s241, 3
          %s243 = scalar_select %p242, %s241, 3
          %s244 = scalar_lea.vmem %s1, %s243
          %s245 = smul.u32 2, %s14
        $region40: #{cosine_loss_forward.1} parent=31 // pred_fallthru
          _
      $region32: #{cosine_loss_forward.1} parent=5 // pred_fallthru
        _
      %p246 = scmp.le.s32.totalorder 1, %s14
      %p247 = scmp.lt.s32.totalorder %s14, 3
      %p248 = pnand %p246, %p247
      %p249 = pneg %p248
      // Predicated region
      $region41: #{cosine_loss_forward.1} parent=5 // pred_check
        _
      $region42: #{cosine_loss_forward.1} parent=5 // pred_check_branch
        %251 = sbr.rel (%p248) target = $region44
      $region43: #{cosine_loss_forward.1} parent=5 // pred_region
        %s252 = ssub.s32 %s14, 1
        // Predicated region
        $region45: #{cosine_loss_forward.1} parent=43 // pred_check
          %p253 = pneg %p87
        $region46: #{cosine_loss_forward.1} parent=43 // pred_check_branch
          %255 = sbr.rel (%p253) target = $region48
        $region47: #{cosine_loss_forward.1} parent=43 // pred_region
          %257 = dma.done [#allocation3], 2048
        $region48: #{cosine_loss_forward.1} parent=43 // pred_fallthru
          _
        // Predicated region
        $region49: #{cosine_loss_forward.1} parent=43 // pred_check
          %p258 = pneg %p129
        $region50: #{cosine_loss_forward.1} parent=43 // pred_check_branch
          %260 = sbr.rel (%p258) target = $region52
        $region51: #{cosine_loss_forward.1} parent=43 // pred_region
          %262 = dma.done [#allocation5], 2048
        $region52: #{cosine_loss_forward.1} parent=43 // pred_fallthru
          _
        %s263 = smul.u32 2, %s19
        %p264 = scmp.lt.s32.totalorder %s263, 3
        %s265 = scalar_select %p264, %s263, 3
        %s266 = smul.addr %s265, 8
        %s267 = scalar_lea.vmem %s0, %s266
        %p268 = pneg %p40
        %p269 = pneg %p37
        %s270 = smul.u32 2, %s19
        %p271 = scmp.lt.s32.totalorder %s270, 3
        %s272 = scalar_select %p271, %s270, 3
        %s273 = scalar_lea.vmem %s1, %s272
        %p274 = pneg %p66
        %p275 = pneg %p63
        %p276 = pneg %p87
        %p277 = pneg %p84
        %p278 = pneg %p108
        %p279 = pneg %p105
        %p280 = pneg %p129
        %p281 = pneg %p126
        %p282 = pneg %p150
        %p283 = pneg %p147
        %p284 = pneg %p176
        %p285 = pneg %p173
        %s286 = smul.u32 2, %s19
        %p287 = scmp.lt.s32.totalorder %s286, 3
        %s288 = scalar_select %p287, %s286, 3
        %s289 = scalar_lea.vmem %s6, %s288
        %s290 = smul.u32 2, %s19
        %p291 = scmp.lt.s32.totalorder %s290, 3
        %s292 = scalar_select %p291, %s290, 3
        %s293 = smul.addr %s292, 8
        %s294 = scalar_lea.vmem %s0, %s293
        %s295 = smul.u32 2, %s19
        %s296 = smul.u32 2, %s19
        %p297 = scmp.lt.s32.totalorder %s296, 3
        %s298 = scalar_select %p297, %s296, 3
        %s299 = scalar_lea.vmem %s1, %s298
        %s300 = smul.u32 2, %s19
        %s301 = smul.u32 2, %s19
        %p302 = scmp.lt.s32.totalorder %s301, 3
        %s303 = scalar_select %p302, %s301, 3
        %s304 = scalar_lea.vmem %s6, %s303
        %s305 = smul.u32 2, %s19
        %v306 = vld [vmem:[%s294] sm:$0xff]
        %v307 = vld [vmem:[%s294 + $0x8] sm:$0xff]
        %v308 = vld [vmem:[%s299] sm:$0x1]
        %v309 = vld [vmem:[%s299 + $0x1] sm:$0x1]
        %v310 = vld [vmem:[#allocation2] sm:$0xff]
        %v311 = vld [vmem:[#allocation2 + $0x8] sm:$0xff]
        %v312 = vld [vmem:[#allocation2 + $0x10] sm:$0xff]
        %v313 = vld [vmem:[#allocation2 + $0x18] sm:$0xff]
        %v314 = vld [vmem:[#allocation2 + $0x20] sm:$0xff]
        %v315 = vld [vmem:[#allocation2 + $0x28] sm:$0xff]
        %v316 = vld [vmem:[#allocation2 + $0x30] sm:$0xff]
        %v317 = vld [vmem:[#allocation2 + $0x38] sm:$0xff]
        %v318 = vld [vmem:[#allocation2 + $0x40] sm:$0xff]
        %v319 = vld [vmem:[#allocation2 + $0x48] sm:$0xff]
        %v320 = vld [vmem:[#allocation2 + $0x50] sm:$0xff]
        %v321 = vld [vmem:[#allocation2 + $0x58] sm:$0xff]
        %v322 = vld [vmem:[#allocation2 + $0x60] sm:$0xff]
        %v323 = vld [vmem:[#allocation2 + $0x68] sm:$0xff]
        %v324 = vld [vmem:[#allocation2 + $0x70] sm:$0xff]
        %v325 = vld [vmem:[#allocation2 + $0x78] sm:$0xff]
        %v326 = vld [vmem:[%s3] sm:$0x1]
        %v327 = vld [vmem:[#allocation4] sm:$0xff]
        %v328 = vld [vmem:[#allocation4 + $0x8] sm:$0xff]
        %v329 = vld [vmem:[#allocation4 + $0x10] sm:$0xff]
        %v330 = vld [vmem:[#allocation4 + $0x18] sm:$0xff]
        %v331 = vld [vmem:[#allocation4 + $0x20] sm:$0xff]
        %v332 = vld [vmem:[#allocation4 + $0x28] sm:$0xff]
        %v333 = vld [vmem:[#allocation4 + $0x30] sm:$0xff]
        %v334 = vld [vmem:[#allocation4 + $0x38] sm:$0xff]
        %v335 = vld [vmem:[#allocation4 + $0x40] sm:$0xff]
        %v336 = vld [vmem:[#allocation4 + $0x48] sm:$0xff]
        %v337 = vld [vmem:[#allocation4 + $0x50] sm:$0xff]
        %v338 = vld [vmem:[#allocation4 + $0x58] sm:$0xff]
        %v339 = vld [vmem:[#allocation4 + $0x60] sm:$0xff]
        %v340 = vld [vmem:[#allocation4 + $0x68] sm:$0xff]
        %v341 = vld [vmem:[#allocation4 + $0x70] sm:$0xff]
        %v342 = vld [vmem:[#allocation4 + $0x78] sm:$0xff]
        %v343 = vld [vmem:[%s5] sm:$0x1]
        %v345 = vperm.slane %v326, 0
        %347 = vmatpush.msra.mxu0 %v325
        %348 = vmatpush.msra.mxu0 %v324
        %349 = vmatpush.msra.mxu0 %v323
        %350 = vmatpush.msra.mxu0 %v322
        %351 = vmatpush.msra.mxu0 %v321
        %352 = vmatpush.msra.mxu0 %v320
        %353 = vmatpush.msra.mxu0 %v319
        %354 = vmatpush.msra.mxu0 %v318
        %355 = vmatpush.msra.mxu0 %v317
        %356 = vmatpush.msra.mxu0 %v316
        %357 = vmatpush.msra.mxu0 %v315
        %358 = vmatpush.msra.mxu0 %v314
        %359 = vmatpush.msra.mxu0 %v313
        %360 = vmatpush.msra.mxu0 %v312
        %361 = vmatpush.msra.mxu0 %v311
        %362 = vmatpush.msra.mxu0 %v310
        %363 = vmatmul.f32.gmra.mxu0 %v306
        %v364 = vpop.f32.mrf.mxu0
        %v365 = vadd.f32 %v345, %v364
        %366 = vmatmul.f32.gmra.mxu0 %v307
        %v367 = vpop.f32.mrf.mxu0
        %v368 = vadd.f32 %v345, %v367
        %369 = vdwg.mxu0
        %v370 = vmax.f32 %v365, 0.0
        %v371 = vmax.f32 %v368, 0.0
        %v373 = vperm.slane %v343, 0
        %375 = vmatpush.msra.mxu0 %v342
        %376 = vmatpush.msra.mxu0 %v341
        %377 = vmatpush.msra.mxu0 %v340
        %378 = vmatpush.msra.mxu0 %v339
        %379 = vmatpush.msra.mxu0 %v338
        %380 = vmatpush.msra.mxu0 %v337
        %381 = vmatpush.msra.mxu0 %v336
        %382 = vmatpush.msra.mxu0 %v335
        %383 = vmatpush.msra.mxu0 %v334
        %384 = vmatpush.msra.mxu0 %v333
        %385 = vmatpush.msra.mxu0 %v332
        %386 = vmatpush.msra.mxu0 %v331
        %387 = vmatpush.msra.mxu0 %v330
        %388 = vmatpush.msra.mxu0 %v329
        %389 = vmatpush.msra.mxu0 %v328
        %390 = vmatpush.msra.mxu0 %v327
        %391 = vmatmul.f32.gmra.mxu0 %v370
        %v392 = vpop.f32.mrf.mxu0
        %v393 = vadd.f32 %v373, %v392
        %394 = vmatmul.f32.gmra.mxu0 %v371
        %v395 = vpop.f32.mrf.mxu0
        %v396 = vadd.f32 %v373, %v395
        %397 = vdwg.mxu0
        %v398 = vrot.slane %v393, 4
        %v399 = vmax.f32 %v393, %v398
        %v400 = vrot.slane %v399, 2
        %v401 = vmax.f32 %v399, %v400
        %v402 = vrot.slane %v401, 1
        %v403 = vmax.f32 %v401, %v402
        %v404 = vrot.slane %v396, 4
        %v405 = vmax.f32 %v396, %v404
        %v406 = vrot.slane %v405, 2
        %v407 = vmax.f32 %v405, %v406
        %v408 = vrot.slane %v407, 1
        %v409 = vmax.f32 %v407, %v408
        %v410 = vsub.f32 %v393, %v403
        %v411 = vsub.f32 %v396, %v409
        %v412 = vmul.f32 %v410, 1.442695
        %v413 = vpow.pop %v412
        %v414 = vmul.f32 %v411, 1.442695
        %v415 = vpow.pop %v414
        %v416 = vrot.slane %v413, 4
        %v417 = vadd.f32 %v413, %v416
        %v418 = vrot.slane %v417, 2
        %v419 = vadd.f32 %v417, %v418
        %v420 = vrot.slane %v419, 1
        %v421 = vadd.f32 %v419, %v420
        %v422 = vrot.slane %v415, 4
        %v423 = vadd.f32 %v415, %v422
        %v424 = vrot.slane %v423, 2
        %v425 = vadd.f32 %v423, %v424
        %v426 = vrot.slane %v425, 1
        %v427 = vadd.f32 %v425, %v426
        %v428 = vrcp.pop %v421
        %v429 = vmul.f32 %v421, %v428
        %v430 = vsub.f32 1.0, %v429
        %v431 = vmul.f32 %v428, %v430
        %v432 = vadd.f32 %v428, %v431
        %vm433 = vweird.f32 %v421
        %vm434 = vweird.f32 %v428
        %vm435 = vmor %vm433, %vm434
        %v436 = vsel %vm435, %v428, %v432
        %v437 = vand.u32 2147483647, %v421
        %vm438 = vcmp.eq.f32.partialorder %v437, 8.507059e+37
        %v439 = vand.u32 %v421, 2147483648
        %v440 = vor.u32 1.1754944e-38, %v439
        %v441 = vsel %vm438, %v440, %v436
        %v442 = vmul.f32 1.0, %v441
        %v443 = vrcp.pop %v427
        %v444 = vmul.f32 %v427, %v443
        %v445 = vsub.f32 1.0, %v444
        %v446 = vmul.f32 %v443, %v445
        %v447 = vadd.f32 %v443, %v446
        %vm448 = vweird.f32 %v427
        %vm449 = vweird.f32 %v443
        %vm450 = vmor %vm448, %vm449
        %v451 = vsel %vm450, %v443, %v447
        %v452 = vand.u32 2147483647, %v427
        %vm453 = vcmp.eq.f32.partialorder %v452, 8.507059e+37
        %v454 = vand.u32 %v427, 2147483648
        %v455 = vor.u32 1.1754944e-38, %v454
        %v456 = vsel %vm453, %v455, %v451
        %v457 = vmul.f32 1.0, %v456
        %v458 = vmul.f32 %v413, %v442
        %v459 = vmul.f32 %v415, %v457
        %v460 = vmul.f32 %v306, %v458
        %v461 = vmul.f32 %v307, %v459
        %vm462 = vcmask 64512
        %v464 = vsel %vm462, %v308, 0
        %466 = vmatpush.msra.mxu0 0.0
        %467 = vmatpush.msra.mxu0 0.0
        %468 = vmatpush.msra.mxu0 0.0
        %469 = vmatpush.msra.mxu0 0.0
        %470 = vmatpush.msra.mxu0 0.0
        %471 = vmatpush.msra.mxu0 0.0
        %472 = vmatpush.msra.mxu0 0.0
        %473 = vmatpush.msra.mxu0 0.0
        %474 = vmatpush.msra.mxu0 0.0
        %475 = vmatpush.msra.mxu0 0.0
        %476 = vmatpush.msra.mxu0 0.0
        %477 = vmatpush.msra.mxu0 0.0
        %478 = vmatpush.msra.mxu0 0.0
        %479 = vmatpush.msra.mxu0 0.0
        %480 = vmatpush.msra.mxu0 0.0
        %481 = vmatpush.msra.mxu0 %v460
        %482 = vmatmul.f32.gmra.mxu0 %v464
        %v483 = vpop.f32.mrf.mxu0
        %v484 = vadd.f32 0.0, %v483
        %485 = vdwg.mxu0
        %v487 = vsel %vm462, %v309, 0
        %489 = vmatpush.msra.mxu0 0.0
        %490 = vmatpush.msra.mxu0 0.0
        %491 = vmatpush.msra.mxu0 0.0
        %492 = vmatpush.msra.mxu0 0.0
        %493 = vmatpush.msra.mxu0 0.0
        %494 = vmatpush.msra.mxu0 0.0
        %495 = vmatpush.msra.mxu0 0.0
        %496 = vmatpush.msra.mxu0 0.0
        %497 = vmatpush.msra.mxu0 0.0
        %498 = vmatpush.msra.mxu0 0.0
        %499 = vmatpush.msra.mxu0 0.0
        %500 = vmatpush.msra.mxu0 0.0
        %501 = vmatpush.msra.mxu0 0.0
        %502 = vmatpush.msra.mxu0 0.0
        %503 = vmatpush.msra.mxu0 0.0
        %504 = vmatpush.msra.mxu0 %v461
        %505 = vmatmul.f32.gmra.mxu0 %v487
        %v506 = vpop.f32.mrf.mxu0
        %v507 = vadd.f32 0.0, %v506
        %508 = vdwg.mxu0
        %vm509 = vcmask 57344
        %v510 = vsel %vm509, %v308, 0.0
        %511 = vadd.xlane.f32.xlu0 %v510
        %v512 = vpop.xlane.xlu0 %511
        %v513 = vsel %vm509, %v309, 0.0
        %514 = vadd.xlane.f32.xlu0 %v513
        %v515 = vpop.xlane.xlu0 %514
        %v516 = vmax.f32 %v512, 1e-09
        %v517 = vmax.f32 %v515, 1e-09
        %v518 = vrcp.pop %v516
        %v519 = vmul.f32 %v516, %v518
        %v520 = vsub.f32 1.0, %v519
        %v521 = vmul.f32 %v518, %v520
        %v522 = vadd.f32 %v518, %v521
        %vm523 = vweird.f32 %v516
        %vm524 = vweird.f32 %v518
        %vm525 = vmor %vm523, %vm524
        %v526 = vsel %vm525, %v518, %v522
        %v527 = vand.u32 2147483647, %v516
        %vm528 = vcmp.eq.f32.partialorder %v527, 8.507059e+37
        %v529 = vand.u32 %v516, 2147483648
        %v530 = vor.u32 1.1754944e-38, %v529
        %v531 = vsel %vm528, %v530, %v526
        %v532 = vmul.f32 1.0, %v531
        %v533 = vrcp.pop %v517
        %v534 = vmul.f32 %v517, %v533
        %v535 = vsub.f32 1.0, %v534
        %v536 = vmul.f32 %v533, %v535
        %v537 = vadd.f32 %v533, %v536
        %vm538 = vweird.f32 %v517
        %vm539 = vweird.f32 %v533
        %vm540 = vmor %vm538, %vm539
        %v541 = vsel %vm540, %v533, %v537
        %v542 = vand.u32 2147483647, %v517
        %vm543 = vcmp.eq.f32.partialorder %v542, 8.507059e+37
        %v544 = vand.u32 %v517, 2147483648
        %v545 = vor.u32 1.1754944e-38, %v544
        %v546 = vsel %vm543, %v545, %v541
        %v547 = vmul.f32 1.0, %v546
        %v548 = vmul.f32 %v484, %v532
        %v549 = vmul.f32 %v507, %v547
        %550 = vst [vmem:[%s304] sm:$0x1] %v548
        %551 = vst [vmem:[%s304 + $0x1] sm:$0x1] %v549
        %s552 = smul.u32 2, %s19
        %p553 = scmp.lt.s32.totalorder %s552, 3
        %s554 = scalar_select %p553, %s552, 3
        %s555 = scalar_lea.vmem %s6, %s554
        // Predicated region
        $region53: #{cosine_loss_forward.1} parent=43 // pred_check
          %p556 = pneg %p173
        $region54: #{cosine_loss_forward.1} parent=43 // pred_check_branch
          %558 = sbr.rel (%p556) target = $region56
        $region55: #{cosine_loss_forward.1} parent=43 // pred_region
          %s559 = smul.u32 2, %s19
        $region56: #{cosine_loss_forward.1} parent=43 // pred_fallthru
          _
      $region44: #{cosine_loss_forward.1} parent=5 // pred_fallthru
        _
      %p560 = scmp.le.s32.totalorder 2, %s14
      // Predicated region
      $region57: #{cosine_loss_forward.1} parent=5 // pred_check
        %p561 = pneg %p560
      $region58: #{cosine_loss_forward.1} parent=5 // pred_check_branch
        %563 = sbr.rel (%p561) target = $region60
      $region59: #{cosine_loss_forward.1} parent=5 // pred_region
        %s564 = ssub.s32 %s14, 2
        // Predicated region
        $region61: #{cosine_loss_forward.1} parent=59 // pred_check
          %p565 = pneg %p179
        $region62: #{cosine_loss_forward.1} parent=59 // pred_check_branch
          %567 = sbr.rel (%p565) target = $region64
        $region63: #{cosine_loss_forward.1} parent=59 // pred_region
          %s568 = smul.u32 2, %s20
          %p569 = scmp.lt.s32.totalorder %s568, 3
          %s570 = scalar_select %p569, %s568, 3
          %s571 = scalar_lea.vmem %s6, %s570
        $region64: #{cosine_loss_forward.1} parent=59 // pred_fallthru
          _
      $region60: #{cosine_loss_forward.1} parent=5 // pred_fallthru
        _
    $region6: #{cosine_loss_forward.1} parent=1 // loop_footer
      %s18 = sadd.s32 1, %s14
    $region7: #{cosine_loss_forward.1} parent=1 // loop_footer_branch
      %13 = sbr.rel target = $region3
    $region8: #{cosine_loss_forward.1} parent=1 // loop_exit
      _
    %572 = vsyncpa [#allocation3], 1
    %s573 = scalar_lea.sflag [#allocation3], 1
    %574 = vsyncpa %s573, 1
    %575 = vsyncpa [#allocation5], 1

</llo_original>
